<compile_context>
chip_gen: v5e
topology: v5e:2x2
jax: 0.10.0
libtpu: 0.0.40
codegen_flags: <defaults>
</compile_context>

<pallas_src>
import jax
import jax.numpy as jnp
from jax import lax
from jax.experimental import pallas as pl
from jax.experimental.pallas import tpu as pltpu


def transh_gather_kernel(h_idx, r_idx, t_idx,        # SMEM scalar-prefetch refs
                         ent_hbm, rel_hbm, w_hbm,    # HBM refs (pl.ANY)
                         o_ref,                      # (TB, 1) VMEM output block
                         h_buf, t_buf, r_buf, w_buf, # (TB, D) VMEM scratch
                         sem):                       # DMA semaphores, shape (4,)
    """Gather rows for one batch tile via DMA, then fused TransH score.

    score = || s - ((s.w)/max(w.w, eps)) * w ||_2 ,  s = h + r - t
    computed as sqrt(max(ss - sw^2 / max(ww, eps), 0)).
    """
    tb = h_buf.shape[0]
    base = pl.program_id(0) * tb

    # --- Issue one row-gather DMA per (table, row); all copies of a table
    #     signal the same semaphore (each signal = D*4 bytes). ---
    def issue(row, carry):
        hid = h_idx[base + row]
        tid = t_idx[base + row]
        rid = r_idx[base + row]
        pltpu.make_async_copy(ent_hbm.at[hid], h_buf.at[row], sem.at[0]).start()
        pltpu.make_async_copy(ent_hbm.at[tid], t_buf.at[row], sem.at[1]).start()
        pltpu.make_async_copy(rel_hbm.at[rid], r_buf.at[row], sem.at[2]).start()
        pltpu.make_async_copy(w_hbm.at[rid],  w_buf.at[row], sem.at[3]).start()
        return carry

    lax.fori_loop(0, tb, issue, 0)

    # --- Drain: wait tb times per semaphore (each wait consumes one row's
    #     worth of bytes), guaranteeing all gathers have landed. ---
    def drain(row, carry):
        pltpu.make_async_copy(ent_hbm.at[0], h_buf.at[0], sem.at[0]).wait()
        pltpu.make_async_copy(ent_hbm.at[0], t_buf.at[0], sem.at[1]).wait()
        pltpu.make_async_copy(rel_hbm.at[0], r_buf.at[0], sem.at[2]).wait()
        pltpu.make_async_copy(w_hbm.at[0],  w_buf.at[0], sem.at[3]).wait()
        return carry

    lax.fori_loop(0, tb, drain, 0)

    # --- Fused projection + distance (all f32, VPU + XLU reductions). ---
    h = h_buf[...]
    t = t_buf[...]
    r = r_buf[...]
    w = w_buf[...]

    s = h + r - t
    sw = jnp.sum(s * w, axis=1, keepdims=True)   # (TB, 1)
    ww = jnp.sum(w * w, axis=1, keepdims=True)   # (TB, 1)
    ss = jnp.sum(s * s, axis=1, keepdims=True)   # (TB, 1)
    # max(w.w, 1e-24) == max(||w||, 1e-12)^2 from the reference normalization.
    # Clamp at 0: when s is nearly parallel to w the subtraction can go
    # slightly negative in f32 and would NaN the sqrt.
    d2 = jnp.maximum(ss - (sw * sw) / jnp.maximum(ww, 1e-24), 0.0)
    o_ref[...] = jnp.sqrt(d2)


def _round_up(x, m):
    return (x + m - 1) // m * m


def transh_forward(ent_emb, rel_emb, rel_norm_w, h, r, t, *, tile_b=None,
                   scratch_budget_bytes=12 * 1024 * 1024):
    """TransH forward: fused gather + projection + L2 distance. Returns (B,)."""
    ent_emb = jnp.asarray(ent_emb, jnp.float32)
    rel_emb = jnp.asarray(rel_emb, jnp.float32)
    rel_norm_w = jnp.asarray(rel_norm_w, jnp.float32)
    h = jnp.asarray(h, jnp.int32)
    r = jnp.asarray(r, jnp.int32)
    t = jnp.asarray(t, jnp.int32)

    B = h.shape[0]
    D = ent_emb.shape[1]

    # Tile size: multiple of 8 sublanes; 4 single-buffered (tb, D) f32 gather
    # buffers must fit the scratch budget (safe on v5e/v6e/v7x VMEM).
    if tile_b is None:
        tb = scratch_budget_bytes // (4 * D * 4)
        tb = max(8, min(512, tb))
    else:
        tb = max(8, int(tile_b))
    tb = _round_up(min(tb, _round_up(B, 8)), 8)

    Bp = _round_up(B, tb)
    if Bp != B:
        # Pad the O(B) index vectors (index 0 is a valid row); padded rows
        # produce finite scores that are sliced off below.
        pad = (0, Bp - B)
        h = jnp.pad(h, pad)
        r = jnp.pad(r, pad)
        t = jnp.pad(t, pad)

    grid = (Bp // tb,)

    out = pl.pallas_call(
        transh_gather_kernel,
        out_shape=jax.ShapeDtypeStruct((Bp, 1), jnp.float32),
        grid_spec=pltpu.PrefetchScalarGridSpec(
            num_scalar_prefetch=3,
            grid=grid,
            in_specs=[
                pl.BlockSpec(memory_space=pl.ANY),   # ent_emb table (HBM)
                pl.BlockSpec(memory_space=pl.ANY),   # rel_emb table (HBM)
                pl.BlockSpec(memory_space=pl.ANY),   # rel_norm table (HBM)
            ],
            out_specs=pl.BlockSpec((tb, 1), lambda i, hh, rr, tt: (i, 0)),
            scratch_shapes=[
                pltpu.VMEM((tb, D), jnp.float32),    # gathered h rows
                pltpu.VMEM((tb, D), jnp.float32),    # gathered t rows
                pltpu.VMEM((tb, D), jnp.float32),    # gathered r rows
                pltpu.VMEM((tb, D), jnp.float32),    # gathered w rows
                pltpu.SemaphoreType.DMA((4,)),
            ],
        ),
        compiler_params=pltpu.CompilerParams(
            dimension_semantics=("parallel",),
            vmem_limit_bytes=40 * 1024 * 1024,
        ),
    )(h, r, t, ent_emb, rel_emb, rel_norm_w)

    return out[:B, 0]


# ----------------------------- test harness -----------------------------

def xavier_uniform(key, shape):
    fan_in, fan_out = shape[0], shape[1]
    bound = jnp.sqrt(6.0 / (fan_in + fan_out))
    return jax.random.uniform(key, shape, jnp.float32, -bound, bound)


def l2_normalize_rows(x, eps=1e-12):
    n = jnp.sqrt(jnp.sum(x * x, axis=1, keepdims=True))
    return x / jnp.maximum(n, eps)


def reference_forward(ent_emb, rel_emb, rel_norm_w, h, r, t):
    """Plain-JAX reference mirroring the PyTorch forward exactly."""
    h_emb = ent_emb[h]
    t_emb = ent_emb[t]
    r_emb = rel_emb[r]
    w_r = l2_normalize_rows(rel_norm_w[r])
    r_p = r_emb - jnp.sum(r_emb * w_r, axis=1, keepdims=True) * w_r
    h_p = h_emb - jnp.sum(h_emb * w_r, axis=1, keepdims=True) * w_r
    t_p = t_emb - jnp.sum(t_emb * w_r, axis=1, keepdims=True) * w_r
    return jnp.linalg.norm(h_p + r_p - t_p, ord=2, axis=1)


if __name__ == "__main__":
    # Small, deterministic synthetic setup (mirrors TransH.__init__ shapes).
    ent_num, rel_num, dim = 50, 10, 32
    batch = 8

    key = jax.random.PRNGKey(0)
    k_ent, k_rel, k_norm, k_h, k_r, k_t = jax.random.split(key, 6)

    # nn.init.xavier_uniform_ then row-wise L2 normalization (as in __init__).
    ent_emb = l2_normalize_rows(xavier_uniform(k_ent, (ent_num, dim)))
    rel_emb = l2_normalize_rows(xavier_uniform(k_rel, (rel_num, dim)))
    rel_norm_w = xavier_uniform(k_norm, (rel_num, dim))  # not normalized at init

    h = jax.random.randint(k_h, (batch,), 0, ent_num, dtype=jnp.int32)
    r = jax.random.randint(k_r, (batch,), 0, rel_num, dtype=jnp.int32)
    t = jax.random.randint(k_t, (batch,), 0, ent_num, dtype=jnp.int32)

    dist = transh_forward(ent_emb, rel_emb, rel_norm_w, h, r, t)
    dist = jax.block_until_ready(dist)

    ref = reference_forward(ent_emb, rel_emb, rel_norm_w, h, r, t)
    assert dist.shape == (batch,)
    assert jnp.allclose(dist, ref, atol=1e-5, rtol=1e-5), (dist, ref)

    # Second check: non-tile-aligned batch with a small forced tile to
    # exercise the multi-tile + index-padding path.
    batch2 = 37
    k_h2, k_r2, k_t2 = jax.random.split(jax.random.PRNGKey(1), 3)
    h2 = jax.random.randint(k_h2, (batch2,), 0, ent_num, dtype=jnp.int32)
    r2 = jax.random.randint(k_r2, (batch2,), 0, rel_num, dtype=jnp.int32)
    t2 = jax.random.randint(k_t2, (batch2,), 0, ent_num, dtype=jnp.int32)

    dist2 = transh_forward(ent_emb, rel_emb, rel_norm_w, h2, r2, t2, tile_b=8)
    dist2 = jax.block_until_ready(dist2)
    ref2 = reference_forward(ent_emb, rel_emb, rel_norm_w, h2, r2, t2)
    assert dist2.shape == (batch2,)
    assert jnp.allclose(dist2, ref2, atol=1e-5, rtol=1e-5), (dist2, ref2)

    print("KERNEL_OK")
</pallas_src>

<mosaic_0001>
module attributes {stable_mosaic.version = 11 : i64} {
  func.func @transh_gather_kernel(%arg0: i32, %arg1: memref<8xi32, #tpu.memory_space<smem>>, %arg2: memref<8xi32, #tpu.memory_space<smem>>, %arg3: memref<8xi32, #tpu.memory_space<smem>>, %arg4: memref<50x32xf32, #tpu.memory_space<any>>, %arg5: memref<10x32xf32, #tpu.memory_space<any>>, %arg6: memref<10x32xf32, #tpu.memory_space<any>>, %arg7: memref<8x1xf32, #tpu.memory_space<vmem>>, %arg8: memref<8x32xf32, #tpu.memory_space<vmem>>, %arg9: memref<8x32xf32, #tpu.memory_space<vmem>>, %arg10: memref<8x32xf32, #tpu.memory_space<vmem>>, %arg11: memref<8x32xf32, #tpu.memory_space<vmem>>, %arg12: memref<4x!tpu.dma_semaphore, #tpu.memory_space<semaphore_mem>>) attributes {dimension_semantics = [#tpu.dimension_semantics<parallel>], iteration_bounds = array<i64: 1>, scalar_prefetch = 3 : i64, scratch_operands = 5 : i64, tpu.core_type = #tpu.core_type<tc>, window_params = [{}, {}, {}, {transform_indices = @transform_3, window_bounds = array<i64: 8, 1>}]} {
    %c8_i32 = arith.constant 8 : i32
    %0 = arith.muli %arg0, %c8_i32 : i32
    %c0_i32 = arith.constant 0 : i32
    %c8_i32_0 = arith.constant 8 : i32
    %1 = arith.addi %c0_i32, %c8_i32_0 : i32
    %c1_i32 = arith.constant 1 : i32
    scf.for %arg13 = %c0_i32 to %1 step %c1_i32  : i32 {
      %27 = arith.addi %0, %arg13 : i32
      %28 = arith.index_cast %27 : i32 to index
      %29 = memref.load %arg1[%28] : memref<8xi32, #tpu.memory_space<smem>>
      %30 = arith.addi %0, %arg13 : i32
      %31 = arith.index_cast %30 : i32 to index
      %32 = memref.load %arg3[%31] : memref<8xi32, #tpu.memory_space<smem>>
      %33 = arith.addi %0, %arg13 : i32
      %34 = arith.index_cast %33 : i32 to index
      %35 = memref.load %arg2[%34] : memref<8xi32, #tpu.memory_space<smem>>
      %c0_i32_18 = arith.constant 0 : i32
      %c0_i32_19 = arith.constant 0 : i32
      %36 = tpu.memref_slice %arg4[%29, %c0_i32_19] : memref<50x32xf32, #tpu.memory_space<any>> -> memref<1x32xf32, #tpu.memory_space<any>>
      %37 = tpu.memref_squeeze %36 : memref<1x32xf32, #tpu.memory_space<any>> -> memref<32xf32, #tpu.memory_space<any>>
      %c0_i32_20 = arith.constant 0 : i32
      %38 = tpu.memref_slice %arg8[%arg13, %c0_i32_20] : memref<8x32xf32, #tpu.memory_space<vmem>> -> memref<1x32xf32, #tpu.memory_space<vmem>>
      %39 = tpu.memref_squeeze %38 : memref<1x32xf32, #tpu.memory_space<vmem>> -> memref<32xf32, #tpu.memory_space<vmem>>
      %40 = tpu.memref_slice %arg12[%c0_i32_18] : memref<4x!tpu.dma_semaphore, #tpu.memory_space<semaphore_mem>> -> memref<1x!tpu.dma_semaphore, #tpu.memory_space<semaphore_mem>>
      %41 = tpu.memref_squeeze %40 : memref<1x!tpu.dma_semaphore, #tpu.memory_space<semaphore_mem>> -> memref<!tpu.dma_semaphore, #tpu.memory_space<semaphore_mem>>
      tpu.enqueue_dma source(%37 : memref<32xf32, #tpu.memory_space<any>>) target(%39 : memref<32xf32, #tpu.memory_space<vmem>>) target_semaphore(%41 : memref<!tpu.dma_semaphore, #tpu.memory_space<semaphore_mem>>)
      %c1_i32_21 = arith.constant 1 : i32
      %c0_i32_22 = arith.constant 0 : i32
      %42 = tpu.memref_slice %arg4[%32, %c0_i32_22] : memref<50x32xf32, #tpu.memory_space<any>> -> memref<1x32xf32, #tpu.memory_space<any>>
      %43 = tpu.memref_squeeze %42 : memref<1x32xf32, #tpu.memory_space<any>> -> memref<32xf32, #tpu.memory_space<any>>
      %c0_i32_23 = arith.constant 0 : i32
      %44 = tpu.memref_slice %arg9[%arg13, %c0_i32_23] : memref<8x32xf32, #tpu.memory_space<vmem>> -> memref<1x32xf32, #tpu.memory_space<vmem>>
      %45 = tpu.memref_squeeze %44 : memref<1x32xf32, #tpu.memory_space<vmem>> -> memref<32xf32, #tpu.memory_space<vmem>>
      %46 = tpu.memref_slice %arg12[%c1_i32_21] : memref<4x!tpu.dma_semaphore, #tpu.memory_space<semaphore_mem>> -> memref<1x!tpu.dma_semaphore, #tpu.memory_space<semaphore_mem>>
      %47 = tpu.memref_squeeze %46 : memref<1x!tpu.dma_semaphore, #tpu.memory_space<semaphore_mem>> -> memref<!tpu.dma_semaphore, #tpu.memory_space<semaphore_mem>>
      tpu.enqueue_dma source(%43 : memref<32xf32, #tpu.memory_space<any>>) target(%45 : memref<32xf32, #tpu.memory_space<vmem>>) target_semaphore(%47 : memref<!tpu.dma_semaphore, #tpu.memory_space<semaphore_mem>>)
      %c2_i32 = arith.constant 2 : i32
      %c0_i32_24 = arith.constant 0 : i32
      %48 = tpu.memref_slice %arg5[%35, %c0_i32_24] : memref<10x32xf32, #tpu.memory_space<any>> -> memref<1x32xf32, #tpu.memory_space<any>>
      %49 = tpu.memref_squeeze %48 : memref<1x32xf32, #tpu.memory_space<any>> -> memref<32xf32, #tpu.memory_space<any>>
      %c0_i32_25 = arith.constant 0 : i32
      %50 = tpu.memref_slice %arg10[%arg13, %c0_i32_25] : memref<8x32xf32, #tpu.memory_space<vmem>> -> memref<1x32xf32, #tpu.memory_space<vmem>>
      %51 = tpu.memref_squeeze %50 : memref<1x32xf32, #tpu.memory_space<vmem>> -> memref<32xf32, #tpu.memory_space<vmem>>
      %52 = tpu.memref_slice %arg12[%c2_i32] : memref<4x!tpu.dma_semaphore, #tpu.memory_space<semaphore_mem>> -> memref<1x!tpu.dma_semaphore, #tpu.memory_space<semaphore_mem>>
      %53 = tpu.memref_squeeze %52 : memref<1x!tpu.dma_semaphore, #tpu.memory_space<semaphore_mem>> -> memref<!tpu.dma_semaphore, #tpu.memory_space<semaphore_mem>>
      tpu.enqueue_dma source(%49 : memref<32xf32, #tpu.memory_space<any>>) target(%51 : memref<32xf32, #tpu.memory_space<vmem>>) target_semaphore(%53 : memref<!tpu.dma_semaphore, #tpu.memory_space<semaphore_mem>>)
      %c3_i32 = arith.constant 3 : i32
      %c0_i32_26 = arith.constant 0 : i32
      %54 = tpu.memref_slice %arg6[%35, %c0_i32_26] : memref<10x32xf32, #tpu.memory_space<any>> -> memref<1x32xf32, #tpu.memory_space<any>>
      %55 = tpu.memref_squeeze %54 : memref<1x32xf32, #tpu.memory_space<any>> -> memref<32xf32, #tpu.memory_space<any>>
      %c0_i32_27 = arith.constant 0 : i32
      %56 = tpu.memref_slice %arg11[%arg13, %c0_i32_27] : memref<8x32xf32, #tpu.memory_space<vmem>> -> memref<1x32xf32, #tpu.memory_space<vmem>>
      %57 = tpu.memref_squeeze %56 : memref<1x32xf32, #tpu.memory_space<vmem>> -> memref<32xf32, #tpu.memory_space<vmem>>
      %58 = tpu.memref_slice %arg12[%c3_i32] : memref<4x!tpu.dma_semaphore, #tpu.memory_space<semaphore_mem>> -> memref<1x!tpu.dma_semaphore, #tpu.memory_space<semaphore_mem>>
      %59 = tpu.memref_squeeze %58 : memref<1x!tpu.dma_semaphore, #tpu.memory_space<semaphore_mem>> -> memref<!tpu.dma_semaphore, #tpu.memory_space<semaphore_mem>>
      tpu.enqueue_dma source(%55 : memref<32xf32, #tpu.memory_space<any>>) target(%57 : memref<32xf32, #tpu.memory_space<vmem>>) target_semaphore(%59 : memref<!tpu.dma_semaphore, #tpu.memory_space<semaphore_mem>>)
    }
    %c8_i32_1 = arith.constant 8 : i32
    %c0_i32_2 = arith.constant 0 : i32
    %c8_i32_3 = arith.constant 8 : i32
    %2 = arith.addi %c0_i32_2, %c8_i32_3 : i32
    %c1_i32_4 = arith.constant 1 : i32
    scf.for %arg13 = %c0_i32_2 to %2 step %c1_i32_4  : i32 {
      %c0_i32_18 = arith.constant 0 : i32
      %c0_i32_19 = arith.constant 0 : i32
      %c0_i32_20 = arith.constant 0 : i32
      %c0_i32_21 = arith.constant 0 : i32
      %27 = tpu.memref_slice %arg4[%c0_i32_18, %c0_i32_21] : memref<50x32xf32, #tpu.memory_space<any>> -> memref<1x32xf32, #tpu.memory_space<any>>
      %28 = tpu.memref_squeeze %27 : memref<1x32xf32, #tpu.memory_space<any>> -> memref<32xf32, #tpu.memory_space<any>>
      %c0_i32_22 = arith.constant 0 : i32
      %29 = tpu.memref_slice %arg8[%c0_i32_19, %c0_i32_22] : memref<8x32xf32, #tpu.memory_space<vmem>> -> memref<1x32xf32, #tpu.memory_space<vmem>>
      %30 = tpu.memref_squeeze %29 : memref<1x32xf32, #tpu.memory_space<vmem>> -> memref<32xf32, #tpu.memory_space<vmem>>
      %31 = tpu.memref_slice %arg12[%c0_i32_20] : memref<4x!tpu.dma_semaphore, #tpu.memory_space<semaphore_mem>> -> memref<1x!tpu.dma_semaphore, #tpu.memory_space<semaphore_mem>>
      %32 = tpu.memref_squeeze %31 : memref<1x!tpu.dma_semaphore, #tpu.memory_space<semaphore_mem>> -> memref<!tpu.dma_semaphore, #tpu.memory_space<semaphore_mem>>
      tpu.wait_dma2 semaphore(%32 : memref<!tpu.dma_semaphore, #tpu.memory_space<semaphore_mem>>) src(%28 : memref<32xf32, #tpu.memory_space<any>>) dst(%30 : memref<32xf32, #tpu.memory_space<vmem>>)
      %c0_i32_23 = arith.constant 0 : i32
      %c0_i32_24 = arith.constant 0 : i32
      %c1_i32_25 = arith.constant 1 : i32
      %c0_i32_26 = arith.constant 0 : i32
      %33 = tpu.memref_slice %arg4[%c0_i32_23, %c0_i32_26] : memref<50x32xf32, #tpu.memory_space<any>> -> memref<1x32xf32, #tpu.memory_space<any>>
      %34 = tpu.memref_squeeze %33 : memref<1x32xf32, #tpu.memory_space<any>> -> memref<32xf32, #tpu.memory_space<any>>
      %c0_i32_27 = arith.constant 0 : i32
      %35 = tpu.memref_slice %arg9[%c0_i32_24, %c0_i32_27] : memref<8x32xf32, #tpu.memory_space<vmem>> -> memref<1x32xf32, #tpu.memory_space<vmem>>
      %36 = tpu.memref_squeeze %35 : memref<1x32xf32, #tpu.memory_space<vmem>> -> memref<32xf32, #tpu.memory_space<vmem>>
      %37 = tpu.memref_slice %arg12[%c1_i32_25] : memref<4x!tpu.dma_semaphore, #tpu.memory_space<semaphore_mem>> -> memref<1x!tpu.dma_semaphore, #tpu.memory_space<semaphore_mem>>
      %38 = tpu.memref_squeeze %37 : memref<1x!tpu.dma_semaphore, #tpu.memory_space<semaphore_mem>> -> memref<!tpu.dma_semaphore, #tpu.memory_space<semaphore_mem>>
      tpu.wait_dma2 semaphore(%38 : memref<!tpu.dma_semaphore, #tpu.memory_space<semaphore_mem>>) src(%34 : memref<32xf32, #tpu.memory_space<any>>) dst(%36 : memref<32xf32, #tpu.memory_space<vmem>>)
      %c0_i32_28 = arith.constant 0 : i32
      %c0_i32_29 = arith.constant 0 : i32
      %c2_i32 = arith.constant 2 : i32
      %c0_i32_30 = arith.constant 0 : i32
      %39 = tpu.memref_slice %arg5[%c0_i32_28, %c0_i32_30] : memref<10x32xf32, #tpu.memory_space<any>> -> memref<1x32xf32, #tpu.memory_space<any>>
      %40 = tpu.memref_squeeze %39 : memref<1x32xf32, #tpu.memory_space<any>> -> memref<32xf32, #tpu.memory_space<any>>
      %c0_i32_31 = arith.constant 0 : i32
      %41 = tpu.memref_slice %arg10[%c0_i32_29, %c0_i32_31] : memref<8x32xf32, #tpu.memory_space<vmem>> -> memref<1x32xf32, #tpu.memory_space<vmem>>
      %42 = tpu.memref_squeeze %41 : memref<1x32xf32, #tpu.memory_space<vmem>> -> memref<32xf32, #tpu.memory_space<vmem>>
      %43 = tpu.memref_slice %arg12[%c2_i32] : memref<4x!tpu.dma_semaphore, #tpu.memory_space<semaphore_mem>> -> memref<1x!tpu.dma_semaphore, #tpu.memory_space<semaphore_mem>>
      %44 = tpu.memref_squeeze %43 : memref<1x!tpu.dma_semaphore, #tpu.memory_space<semaphore_mem>> -> memref<!tpu.dma_semaphore, #tpu.memory_space<semaphore_mem>>
      tpu.wait_dma2 semaphore(%44 : memref<!tpu.dma_semaphore, #tpu.memory_space<semaphore_mem>>) src(%40 : memref<32xf32, #tpu.memory_space<any>>) dst(%42 : memref<32xf32, #tpu.memory_space<vmem>>)
      %c0_i32_32 = arith.constant 0 : i32
      %c0_i32_33 = arith.constant 0 : i32
      %c3_i32 = arith.constant 3 : i32
      %c0_i32_34 = arith.constant 0 : i32
      %45 = tpu.memref_slice %arg6[%c0_i32_32, %c0_i32_34] : memref<10x32xf32, #tpu.memory_space<any>> -> memref<1x32xf32, #tpu.memory_space<any>>
      %46 = tpu.memref_squeeze %45 : memref<1x32xf32, #tpu.memory_space<any>> -> memref<32xf32, #tpu.memory_space<any>>
      %c0_i32_35 = arith.constant 0 : i32
      %47 = tpu.memref_slice %arg11[%c0_i32_33, %c0_i32_35] : memref<8x32xf32, #tpu.memory_space<vmem>> -> memref<1x32xf32, #tpu.memory_space<vmem>>
      %48 = tpu.memref_squeeze %47 : memref<1x32xf32, #tpu.memory_space<vmem>> -> memref<32xf32, #tpu.memory_space<vmem>>
      %49 = tpu.memref_slice %arg12[%c3_i32] : memref<4x!tpu.dma_semaphore, #tpu.memory_space<semaphore_mem>> -> memref<1x!tpu.dma_semaphore, #tpu.memory_space<semaphore_mem>>
      %50 = tpu.memref_squeeze %49 : memref<1x!tpu.dma_semaphore, #tpu.memory_space<semaphore_mem>> -> memref<!tpu.dma_semaphore, #tpu.memory_space<semaphore_mem>>
      tpu.wait_dma2 semaphore(%50 : memref<!tpu.dma_semaphore, #tpu.memory_space<semaphore_mem>>) src(%46 : memref<32xf32, #tpu.memory_space<any>>) dst(%48 : memref<32xf32, #tpu.memory_space<vmem>>)
    }
    %c0 = arith.constant 0 : index
    %c0_5 = arith.constant 0 : index
    %3 = vector.load %arg8[%c0, %c0_5] : memref<8x32xf32, #tpu.memory_space<vmem>>, vector<8x32xf32>
    %c0_6 = arith.constant 0 : index
    %c0_7 = arith.constant 0 : index
    %4 = vector.load %arg9[%c0_6, %c0_7] : memref<8x32xf32, #tpu.memory_space<vmem>>, vector<8x32xf32>
    %c0_8 = arith.constant 0 : index
    %c0_9 = arith.constant 0 : index
    %5 = vector.load %arg10[%c0_8, %c0_9] : memref<8x32xf32, #tpu.memory_space<vmem>>, vector<8x32xf32>
    %c0_10 = arith.constant 0 : index
    %c0_11 = arith.constant 0 : index
    %6 = vector.load %arg11[%c0_10, %c0_11] : memref<8x32xf32, #tpu.memory_space<vmem>>, vector<8x32xf32>
    %7 = arith.addf %3, %5 : vector<8x32xf32>
    %8 = arith.subf %7, %4 : vector<8x32xf32>
    %9 = arith.mulf %8, %6 : vector<8x32xf32>
    %cst = arith.constant dense<0.000000e+00> : vector<8xf32>
    %10 = vector.multi_reduction <add>, %9, %cst [1] : vector<8x32xf32> to vector<8xf32>
    %11 = vector.shape_cast %10 : vector<8xf32> to vector<8x1xf32>
    %12 = arith.mulf %6, %6 : vector<8x32xf32>
    %cst_12 = arith.constant dense<0.000000e+00> : vector<8xf32>
    %13 = vector.multi_reduction <add>, %12, %cst_12 [1] : vector<8x32xf32> to vector<8xf32>
    %14 = vector.shape_cast %13 : vector<8xf32> to vector<8x1xf32>
    %15 = arith.mulf %8, %8 : vector<8x32xf32>
    %cst_13 = arith.constant dense<0.000000e+00> : vector<8xf32>
    %16 = vector.multi_reduction <add>, %15, %cst_13 [1] : vector<8x32xf32> to vector<8xf32>
    %17 = vector.shape_cast %16 : vector<8xf32> to vector<8x1xf32>
    %18 = arith.mulf %11, %11 : vector<8x1xf32>
    %cst_14 = arith.constant 1.000000e-24 : f32
    %19 = vector.broadcast %cst_14 : f32 to vector<8x1xf32>
    %20 = arith.maximumf %14, %19 : vector<8x1xf32>
    %21 = arith.divf %18, %20 : vector<8x1xf32>
    %22 = arith.subf %17, %21 : vector<8x1xf32>
    %cst_15 = arith.constant 0.000000e+00 : f32
    %23 = vector.broadcast %cst_15 : f32 to vector<8x1xf32>
    %24 = arith.maximumf %22, %23 : vector<8x1xf32>
    %25 = math.sqrt %24 : vector<8x1xf32>
    %c0_16 = arith.constant 0 : index
    %c0_17 = arith.constant 0 : index
    %26 = vector.load %arg7[%c0_16, %c0_17] : memref<8x1xf32, #tpu.memory_space<vmem>>, vector<8x1xf32>
    tpu.vector_store %arg7[%c0_16, %c0_17], %25 {strides = array<i32>} : memref<8x1xf32, #tpu.memory_space<vmem>>, vector<8x1xf32>,
    return
  }
  func.func @transform_3(%arg0: i32, %arg1: memref<8xi32, #tpu.memory_space<smem>>, %arg2: memref<8xi32, #tpu.memory_space<smem>>, %arg3: memref<8xi32, #tpu.memory_space<smem>>) -> (i32, i32) {
    %c0_i32 = arith.constant 0 : i32
    %c0_i32_0 = arith.constant 0 : i32
    return %arg0, %c0_i32 : i32, i32
  }
}

</mosaic_0001>

<llo_original>
// kernel: tpu_custom_call.1
$region0: #{tpu_custom_call.1}
  #allocation0 [shape = 'u32[]', space=smem, size = 0x4, offset = 0x4, fixed_abs, tag = 'smem constant byte address 0x4 - core index']
  #allocation1 [shape = 'u32[72,128]{1,0:T(1,128)}', space=vmem, size = 0x9000, scoped, tag = 'internal scratch']
  #allocation2 [shape = 'f32[8,32]{1,0:T(8,128)}', space=vmem, size = 0x1000, scoped, tag = 'scratch operand']
  #allocation3 [shape = 'f32[8,32]{1,0:T(8,128)}', space=vmem, size = 0x1000, scoped, tag = 'scratch operand']
  #allocation4 [shape = 'f32[8,32]{1,0:T(8,128)}', space=vmem, size = 0x1000, scoped, tag = 'scratch operand']
  #allocation5 [shape = 'f32[8,32]{1,0:T(8,128)}', space=vmem, size = 0x1000, scoped, tag = 'scratch operand']
  #allocation6 [shape = 's32[4]{0}', space=sflag, size = 0x10, scoped, tag = 'scratch operand']
  #allocation7 [shape = 's32[1]{0}', space=sflag, size = 0x4, scoped, tag = 'scoped memory for tpu_custom_call.1']
  #allocation8 [shape = 'u8[512]{0}', space=smem, size = 0x200, scoped, tag = 'prefetched SMEM operand 0']
  #allocation9 [shape = 'u8[512]{0}', space=smem, size = 0x200, scoped, tag = 'prefetched SMEM operand 1']
  #allocation10 [shape = 'u8[512]{0}', space=smem, size = 0x200, scoped, tag = 'prefetched SMEM operand 2']
  #allocation11 [shape = 's32[]', space=sflag, size = 0x4, offset = 0, fixed_abs, tag = 'sflag constant byte address 0x0 - dummy sync flag']
  #allocation12 [shape = 's32[]', space=sflag, size = 0x4, offset = 0, fixed_abs, tag = 'sflag constant byte address 0x0 - dummy sync flag']
  #allocation13 [shape = 's32[]', space=sflag, size = 0x4, offset = 0, fixed_abs, tag = 'sflag constant byte address 0x0 - dummy sync flag']
  #allocation14 [shape = 's32[]', space=sflag, size = 0x4, offset = 0, fixed_abs, tag = 'sflag constant byte address 0x0 - dummy sync flag']
  %s0 = inlined_call_operand.vmem [shape: s32[8], index: 0, kind: input, shape index: {}]
  %s1 = inlined_call_operand.vmem [shape: s32[8], index: 1, kind: input, shape index: {}]
  %s2 = inlined_call_operand.vmem [shape: s32[8], index: 2, kind: input, shape index: {}]
  %s3 = inlined_call_operand.vmem [shape: f32[50,32], index: 3, kind: input, shape index: {}]
  %s4 = inlined_call_operand.vmem [shape: f32[10,32], index: 4, kind: input, shape index: {}]
  %s5 = inlined_call_operand.vmem [shape: f32[10,32], index: 5, kind: input, shape index: {}]
  %s6 = inlined_call_operand.vmem [shape: f32[8,1], index: 6, kind: output, shape index: {}]
  %s7 = sld [smem:[#allocation0]]
  $region144: #{tpu_custom_call.1} parent=0
    _
  %s9 = ssub.s32 1, %s7
  %s10 = scalar_select 0, %s9, %s7
  %s12 = sshll.u32 %s0, 4
  %s13 = int_to_ptr.vmem [resolvable:$true] %s12
  %15 = dma.vmem_to_smem %s13, 16, [#allocation8], [#allocation7]
  %s17 = sshll.u32 %s1, 4
  %s18 = int_to_ptr.vmem [resolvable:$true] %s17
  %20 = dma.vmem_to_smem %s18, 16, [#allocation9], [#allocation7]
  %s22 = sshll.u32 %s2, 4
  %s23 = int_to_ptr.vmem [resolvable:$true] %s22
  %25 = dma.vmem_to_smem %s23, 16, [#allocation10], [#allocation7]
  %27 = dma.done [#allocation7], 48
  %28 = sfence
  %s29 = smul.u32 0, 8
  loop: start=0, step=1, limit=8
  $region2: #{tpu_custom_call.1} parent=0 // loop_pre_header
    _
  $region3: #{tpu_custom_call.1} parent=0 // loop_header
    %s31 = sphi 0, %s35
    %p32 = scmp.ge.s32.totalorder %s31, 8
  $region4: #{tpu_custom_call.1} parent=0 // loop_header_branch
    %34 = sbr.rel (%p32) target = $region8
  $region5: #{tpu_custom_call.1} parent=0 // loop_body
    %s36 = sadd.s32 %s29, %s31
    %s37 = sld [smem:[#allocation8 + %s36]]
    %s38 = sld [smem:[#allocation10 + %s36]]
    %s39 = sld [smem:[#allocation9 + %s36]]
    %s40 = scalar_lea.vmem %s3, %s37
    %s41 = scalar_lea.vmem [#allocation2], %s31
    // Predicated region
    $region9: #{tpu_custom_call.1} parent=5 // pred_check
      _
    $region10: #{tpu_custom_call.1} parent=5 // pred_check_branch
      %43 = sbr.rel target = $region12
    $region11: #{tpu_custom_call.1} parent=5 // pred_region
      // Predicated region
      $region24: #{tpu_custom_call.1} parent=11 // pred_check
        _
      $region25: #{tpu_custom_call.1} parent=11 // pred_check_branch
        %59 = sbr.rel (0) target = $region27
      $region26: #{tpu_custom_call.1} parent=11 // pred_region
        %s61 = ssub.s32 2, 1
        loop: start=0, step=1, limit=1
        $region28: #{tpu_custom_call.1} parent=26 // loop_pre_header
          _
        $region29: #{tpu_custom_call.1} parent=26 // loop_header
          %s63 = sphi 0, %s67
          %p64 = scmp.ge.s32.totalorder %s63, 1
          %s68 = sphi %s40, %s40
          %s69 = sphi %s41, %s41
        $region30: #{tpu_custom_call.1} parent=26 // loop_header_branch
          %66 = sbr.rel (%p64) target = $region34
        $region31: #{tpu_custom_call.1} parent=26 // loop_body
          %v70 = vld [vmem:[%s68] sm:%s61]
          %71 = vst [vmem:[%s69] sm:%s61] %v70
        $region32: #{tpu_custom_call.1} parent=26 // loop_footer
          %s67 = sadd.s32 1, %s63
        $region33: #{tpu_custom_call.1} parent=26 // loop_footer_branch
          %62 = sbr.rel target = $region29
        $region34: #{tpu_custom_call.1} parent=26 // loop_exit
          _
      $region27: #{tpu_custom_call.1} parent=11 // pred_fallthru
        _
    $region12: #{tpu_custom_call.1} parent=5 // pred_fallthru
      _
    // Predicated region
    $region13: #{tpu_custom_call.1} parent=5 // pred_check
      _
    $region14: #{tpu_custom_call.1} parent=5 // pred_check_branch
      %45 = sbr.rel (0) target = $region16
    $region15: #{tpu_custom_call.1} parent=5 // pred_region
      %s47 = ssub.s32 2, 1
      loop: start=0, step=1, limit=1
      $region17: #{tpu_custom_call.1} parent=15 // loop_pre_header
        _
      $region18: #{tpu_custom_call.1} parent=15 // loop_header
        %s49 = sphi 0, %s53
        %p50 = scmp.ge.s32.totalorder %s49, 1
        %s54 = sphi %s40, %s40
        %s55 = sphi %s41, %s41
      $region19: #{tpu_custom_call.1} parent=15 // loop_header_branch
        %52 = sbr.rel (%p50) target = $region23
      $region20: #{tpu_custom_call.1} parent=15 // loop_body
        %v56 = vld [vmem:[%s54] sm:%s47]
        %57 = vst [vmem:[%s55] sm:%s47] %v56
      $region21: #{tpu_custom_call.1} parent=15 // loop_footer
        %s53 = sadd.s32 1, %s49
      $region22: #{tpu_custom_call.1} parent=15 // loop_footer_branch
        %48 = sbr.rel target = $region18
      $region23: #{tpu_custom_call.1} parent=15 // loop_exit
        _
    $region16: #{tpu_custom_call.1} parent=5 // pred_fallthru
      _
    // Predicated region
    $region35: #{tpu_custom_call.1} parent=5 // pred_check
      _
    $region36: #{tpu_custom_call.1} parent=5 // pred_check_branch
      %74 = sbr.rel (0) target = $region38
    $region37: #{tpu_custom_call.1} parent=5 // pred_region
      %75 = vsyncadd [#allocation6], 16
    $region38: #{tpu_custom_call.1} parent=5 // pred_fallthru
      _
    %s76 = scalar_lea.vmem %s3, %s38
    %s77 = scalar_lea.vmem [#allocation3], %s31
    %s78 = scalar_lea.sflag [#allocation6], 1
    // Predicated region
    $region39: #{tpu_custom_call.1} parent=5 // pred_check
      _
    $region40: #{tpu_custom_call.1} parent=5 // pred_check_branch
      %80 = sbr.rel target = $region42
    $region41: #{tpu_custom_call.1} parent=5 // pred_region
      // Predicated region
      $region54: #{tpu_custom_call.1} parent=41 // pred_check
        _
      $region55: #{tpu_custom_call.1} parent=41 // pred_check_branch
        %96 = sbr.rel (0) target = $region57
      $region56: #{tpu_custom_call.1} parent=41 // pred_region
        %s98 = ssub.s32 2, 1
        loop: start=0, step=1, limit=1
        $region58: #{tpu_custom_call.1} parent=56 // loop_pre_header
          _
        $region59: #{tpu_custom_call.1} parent=56 // loop_header
          %s100 = sphi 0, %s104
          %p101 = scmp.ge.s32.totalorder %s100, 1
          %s105 = sphi %s76, %s76
          %s106 = sphi %s77, %s77
        $region60: #{tpu_custom_call.1} parent=56 // loop_header_branch
          %103 = sbr.rel (%p101) target = $region64
        $region61: #{tpu_custom_call.1} parent=56 // loop_body
          %v107 = vld [vmem:[%s105] sm:%s98]
          %108 = vst [vmem:[%s106] sm:%s98] %v107
        $region62: #{tpu_custom_call.1} parent=56 // loop_footer
          %s104 = sadd.s32 1, %s100
        $region63: #{tpu_custom_call.1} parent=56 // loop_footer_branch
          %99 = sbr.rel target = $region59
        $region64: #{tpu_custom_call.1} parent=56 // loop_exit
          _
      $region57: #{tpu_custom_call.1} parent=41 // pred_fallthru
        _
    $region42: #{tpu_custom_call.1} parent=5 // pred_fallthru
      _
    // Predicated region
    $region43: #{tpu_custom_call.1} parent=5 // pred_check
      _
    $region44: #{tpu_custom_call.1} parent=5 // pred_check_branch
      %82 = sbr.rel (0) target = $region46
    $region45: #{tpu_custom_call.1} parent=5 // pred_region
      %s84 = ssub.s32 2, 1
      loop: start=0, step=1, limit=1
      $region47: #{tpu_custom_call.1} parent=45 // loop_pre_header
        _
      $region48: #{tpu_custom_call.1} parent=45 // loop_header
        %s86 = sphi 0, %s90
        %p87 = scmp.ge.s32.totalorder %s86, 1
        %s91 = sphi %s76, %s76
        %s92 = sphi %s77, %s77
      $region49: #{tpu_custom_call.1} parent=45 // loop_header_branch
        %89 = sbr.rel (%p87) target = $region53
      $region50: #{tpu_custom_call.1} parent=45 // loop_body
        %v93 = vld [vmem:[%s91] sm:%s84]
        %94 = vst [vmem:[%s92] sm:%s84] %v93
      $region51: #{tpu_custom_call.1} parent=45 // loop_footer
        %s90 = sadd.s32 1, %s86
      $region52: #{tpu_custom_call.1} parent=45 // loop_footer_branch
        %85 = sbr.rel target = $region48
      $region53: #{tpu_custom_call.1} parent=45 // loop_exit
        _
    $region46: #{tpu_custom_call.1} parent=5 // pred_fallthru
      _
    // Predicated region
    $region65: #{tpu_custom_call.1} parent=5 // pred_check
      _
    $region66: #{tpu_custom_call.1} parent=5 // pred_check_branch
      %111 = sbr.rel (0) target = $region68
    $region67: #{tpu_custom_call.1} parent=5 // pred_region
      %112 = vsyncadd %s78, 16
    $region68: #{tpu_custom_call.1} parent=5 // pred_fallthru
      _
    %s113 = scalar_lea.vmem %s4, %s39
    %s114 = scalar_lea.vmem [#allocation4], %s31
    %s115 = scalar_lea.sflag [#allocation6], 2
    // Predicated region
    $region69: #{tpu_custom_call.1} parent=5 // pred_check
      _
    $region70: #{tpu_custom_call.1} parent=5 // pred_check_branch
      %117 = sbr.rel target = $region72
    $region71: #{tpu_custom_call.1} parent=5 // pred_region
      // Predicated region
      $region84: #{tpu_custom_call.1} parent=71 // pred_check
        _
      $region85: #{tpu_custom_call.1} parent=71 // pred_check_branch
        %133 = sbr.rel (0) target = $region87
      $region86: #{tpu_custom_call.1} parent=71 // pred_region
        %s135 = ssub.s32 2, 1
        loop: start=0, step=1, limit=1
        $region88: #{tpu_custom_call.1} parent=86 // loop_pre_header
          _
        $region89: #{tpu_custom_call.1} parent=86 // loop_header
          %s137 = sphi 0, %s141
          %p138 = scmp.ge.s32.totalorder %s137, 1
          %s142 = sphi %s113, %s113
          %s143 = sphi %s114, %s114
        $region90: #{tpu_custom_call.1} parent=86 // loop_header_branch
          %140 = sbr.rel (%p138) target = $region94
        $region91: #{tpu_custom_call.1} parent=86 // loop_body
          %v144 = vld [vmem:[%s142] sm:%s135]
          %145 = vst [vmem:[%s143] sm:%s135] %v144
        $region92: #{tpu_custom_call.1} parent=86 // loop_footer
          %s141 = sadd.s32 1, %s137
        $region93: #{tpu_custom_call.1} parent=86 // loop_footer_branch
          %136 = sbr.rel target = $region89
        $region94: #{tpu_custom_call.1} parent=86 // loop_exit
          _
      $region87: #{tpu_custom_call.1} parent=71 // pred_fallthru
        _
    $region72: #{tpu_custom_call.1} parent=5 // pred_fallthru
      _
    // Predicated region
    $region73: #{tpu_custom_call.1} parent=5 // pred_check
      _
    $region74: #{tpu_custom_call.1} parent=5 // pred_check_branch
      %119 = sbr.rel (0) target = $region76
    $region75: #{tpu_custom_call.1} parent=5 // pred_region
      %s121 = ssub.s32 2, 1
      loop: start=0, step=1, limit=1
      $region77: #{tpu_custom_call.1} parent=75 // loop_pre_header
        _
      $region78: #{tpu_custom_call.1} parent=75 // loop_header
        %s123 = sphi 0, %s127
        %p124 = scmp.ge.s32.totalorder %s123, 1
        %s128 = sphi %s113, %s113
        %s129 = sphi %s114, %s114
      $region79: #{tpu_custom_call.1} parent=75 // loop_header_branch
        %126 = sbr.rel (%p124) target = $region83
      $region80: #{tpu_custom_call.1} parent=75 // loop_body
        %v130 = vld [vmem:[%s128] sm:%s121]
        %131 = vst [vmem:[%s129] sm:%s121] %v130
      $region81: #{tpu_custom_call.1} parent=75 // loop_footer
        %s127 = sadd.s32 1, %s123
      $region82: #{tpu_custom_call.1} parent=75 // loop_footer_branch
        %122 = sbr.rel target = $region78
      $region83: #{tpu_custom_call.1} parent=75 // loop_exit
        _
    $region76: #{tpu_custom_call.1} parent=5 // pred_fallthru
      _
    // Predicated region
    $region95: #{tpu_custom_call.1} parent=5 // pred_check
      _
    $region96: #{tpu_custom_call.1} parent=5 // pred_check_branch
      %148 = sbr.rel (0) target = $region98
    $region97: #{tpu_custom_call.1} parent=5 // pred_region
      %149 = vsyncadd %s115, 16
    $region98: #{tpu_custom_call.1} parent=5 // pred_fallthru
      _
    %s150 = scalar_lea.vmem %s5, %s39
    %s151 = scalar_lea.vmem [#allocation5], %s31
    %s152 = scalar_lea.sflag [#allocation6], 3
    // Predicated region
    $region99: #{tpu_custom_call.1} parent=5 // pred_check
      _
    $region100: #{tpu_custom_call.1} parent=5 // pred_check_branch
      %154 = sbr.rel target = $region102
    $region101: #{tpu_custom_call.1} parent=5 // pred_region
      // Predicated region
      $region114: #{tpu_custom_call.1} parent=101 // pred_check
        _
      $region115: #{tpu_custom_call.1} parent=101 // pred_check_branch
        %170 = sbr.rel (0) target = $region117
      $region116: #{tpu_custom_call.1} parent=101 // pred_region
        %s172 = ssub.s32 2, 1
        loop: start=0, step=1, limit=1
        $region118: #{tpu_custom_call.1} parent=116 // loop_pre_header
          _
        $region119: #{tpu_custom_call.1} parent=116 // loop_header
          %s174 = sphi 0, %s178
          %p175 = scmp.ge.s32.totalorder %s174, 1
          %s179 = sphi %s150, %s150
          %s180 = sphi %s151, %s151
        $region120: #{tpu_custom_call.1} parent=116 // loop_header_branch
          %177 = sbr.rel (%p175) target = $region124
        $region121: #{tpu_custom_call.1} parent=116 // loop_body
          %v181 = vld [vmem:[%s179] sm:%s172]
          %182 = vst [vmem:[%s180] sm:%s172] %v181
        $region122: #{tpu_custom_call.1} parent=116 // loop_footer
          %s178 = sadd.s32 1, %s174
        $region123: #{tpu_custom_call.1} parent=116 // loop_footer_branch
          %173 = sbr.rel target = $region119
        $region124: #{tpu_custom_call.1} parent=116 // loop_exit
          _
      $region117: #{tpu_custom_call.1} parent=101 // pred_fallthru
        _
    $region102: #{tpu_custom_call.1} parent=5 // pred_fallthru
      _
    // Predicated region
    $region103: #{tpu_custom_call.1} parent=5 // pred_check
      _
    $region104: #{tpu_custom_call.1} parent=5 // pred_check_branch
      %156 = sbr.rel (0) target = $region106
    $region105: #{tpu_custom_call.1} parent=5 // pred_region
      %s158 = ssub.s32 2, 1
      loop: start=0, step=1, limit=1
      $region107: #{tpu_custom_call.1} parent=105 // loop_pre_header
        _
      $region108: #{tpu_custom_call.1} parent=105 // loop_header
        %s160 = sphi 0, %s164
        %p161 = scmp.ge.s32.totalorder %s160, 1
        %s165 = sphi %s150, %s150
        %s166 = sphi %s151, %s151
      $region109: #{tpu_custom_call.1} parent=105 // loop_header_branch
        %163 = sbr.rel (%p161) target = $region113
      $region110: #{tpu_custom_call.1} parent=105 // loop_body
        %v167 = vld [vmem:[%s165] sm:%s158]
        %168 = vst [vmem:[%s166] sm:%s158] %v167
      $region111: #{tpu_custom_call.1} parent=105 // loop_footer
        %s164 = sadd.s32 1, %s160
      $region112: #{tpu_custom_call.1} parent=105 // loop_footer_branch
        %159 = sbr.rel target = $region108
      $region113: #{tpu_custom_call.1} parent=105 // loop_exit
        _
    $region106: #{tpu_custom_call.1} parent=5 // pred_fallthru
      _
    // Predicated region
    $region125: #{tpu_custom_call.1} parent=5 // pred_check
      _
    $region126: #{tpu_custom_call.1} parent=5 // pred_check_branch
      %185 = sbr.rel (0) target = $region128
    $region127: #{tpu_custom_call.1} parent=5 // pred_region
      %186 = vsyncadd %s152, 16
    $region128: #{tpu_custom_call.1} parent=5 // pred_fallthru
      _
  $region6: #{tpu_custom_call.1} parent=0 // loop_footer
    %s35 = sadd.s32 1, %s31
  $region7: #{tpu_custom_call.1} parent=0 // loop_footer_branch
    %30 = sbr.rel target = $region3
  $region8: #{tpu_custom_call.1} parent=0 // loop_exit
    _
  loop: start=0, step=1, limit=8
  $region129: #{tpu_custom_call.1} parent=0 // loop_pre_header
    _
  $region130: #{tpu_custom_call.1} parent=0 // loop_header
    %s188 = sphi 0, %s192
    %p189 = scmp.ge.s32.totalorder %s188, 8
  $region131: #{tpu_custom_call.1} parent=0 // loop_header_branch
    %191 = sbr.rel (%p189) target = $region135
  $region132: #{tpu_custom_call.1} parent=0 // loop_body
    %194 = dma.done [#allocation6], 16
    %s195 = scalar_lea.sflag [#allocation6], 1
    %197 = dma.done %s195, 16
    %s198 = scalar_lea.sflag [#allocation6], 2
    %200 = dma.done %s198, 16
    %s201 = scalar_lea.sflag [#allocation6], 3
    %203 = dma.done %s201, 16
  $region133: #{tpu_custom_call.1} parent=0 // loop_footer
    %s192 = sadd.s32 1, %s188
  $region134: #{tpu_custom_call.1} parent=0 // loop_footer_branch
    %187 = sbr.rel target = $region130
  $region135: #{tpu_custom_call.1} parent=0 // loop_exit
    _
  %v204 = vld [vmem:[#allocation2] sm:$0xff]
  %v205 = vld [vmem:[#allocation3] sm:$0xff]
  %v206 = vld [vmem:[#allocation4] sm:$0xff]
  %v207 = vld [vmem:[#allocation5] sm:$0xff]
  %v208 = vadd.f32 %v204, %v206
  %v209 = vsub.f32 %v208, %v205
  %v210 = vmul.f32 %v209, %v207
  %vm211 = vcmask 261120
  %v212 = vsel %vm211, %v210, 0.0
  %213 = vadd.xlane.f32.xlu0 %v212
  %v214 = vpop.xlane.xlu0 %213
  %v215 = vmul.f32 %v207, %v207
  %v216 = vsel %vm211, %v215, 0.0
  %217 = vadd.xlane.f32.xlu0 %v216
  %v218 = vpop.xlane.xlu0 %217
  %v219 = vmul.f32 %v209, %v209
  %v220 = vsel %vm211, %v219, 0.0
  %221 = vadd.xlane.f32.xlu0 %v220
  %v222 = vpop.xlane.xlu0 %221
  %v223 = vmul.f32 %v214, %v214
  %v224 = vmax.f32 %v218, 1e-24
  %v225 = vrcp.pop %v224
  %v226 = vmul.f32 %v224, %v225
  %v227 = vsub.f32 1.0, %v226
  %v228 = vmul.f32 %v225, %v227
  %v229 = vadd.f32 %v225, %v228
  %vm230 = vweird.f32 %v224
  %vm231 = vweird.f32 %v225
  %vm232 = vmor %vm230, %vm231
  %v233 = vsel %vm232, %v225, %v229
  %v234 = vand.u32 2147483647, %v224
  %vm235 = vcmp.eq.f32.partialorder %v234, 8.507059e+37
  %v236 = vand.u32 %v224, 2147483648
  %v237 = vor.u32 1.1754944e-38, %v236
  %v238 = vsel %vm235, %v237, %v233
  %v239 = vmul.f32 %v223, %v238
  %v240 = vsub.f32 %v222, %v239
  %v241 = vmax.f32 %v240, 0.0
  %v242 = vrsqrt.pop %v241
  %v243 = vmul.f32 %v242, %v241
  %v244 = vmul.f32 %v243, %v242
  %v245 = vmul.f32 0.5, %v244
  %v246 = vsub.f32 1.5, %v245
  %v247 = vmul.f32 %v242, %v246
  %v248 = vmul.f32 %v241, %v247
  %vm249 = vcmp.eq.f32.partialorder %v241, inf
  %v250 = vsel %vm249, %v241, %v248
  %vm251 = vcmp.eq.f32.partialorder %v241, 0.0
  %v252 = vand.u32 %v241, 2147483648
  %v253 = vsel %vm251, %v252, %v250
  %vm254 = vcmask 7168
  %255 = vst.msk [vmem:[%s6] sm:$0xff] %vm254, %v253
  // Predicated region
  $region136: #{tpu_custom_call.1} parent=0 // pred_check
    _
  $region137: #{tpu_custom_call.1} parent=0 // pred_check_branch
    %257 = sbr.rel (0) target = $region139
  $region138: #{tpu_custom_call.1} parent=0 // pred_region
    _
  $region139: #{tpu_custom_call.1} parent=0 // pred_fallthru
    _
  // Predicated region
  $region140: #{tpu_custom_call.1} parent=0 // pred_check
    _
  $region141: #{tpu_custom_call.1} parent=0 // pred_check_branch
    %259 = sbr.rel (0) target = $region143
  $region142: #{tpu_custom_call.1} parent=0 // pred_region
    _
  $region143: #{tpu_custom_call.1} parent=0 // pred_fallthru
    _
  %260 = vsyncmov [#allocation6]
  %s261 = vpop.sfrf %260
  %p262 = scmp.eq.s32.totalorder %s261, 0
  %p263 = pneg %p262
  %265 = shalt.err (%p263)
  %s266 = scalar_lea.sflag [#allocation6], 1
  %267 = vsyncmov %s266
  %s268 = vpop.sfrf %267
  %p269 = scmp.eq.s32.totalorder %s268, 0
  %p270 = pneg %p269
  %272 = shalt.err (%p270)
  %s273 = scalar_lea.sflag [#allocation6], 2
  %274 = vsyncmov %s273
  %s275 = vpop.sfrf %274
  %p276 = scmp.eq.s32.totalorder %s275, 0
  %p277 = pneg %p276
  %279 = shalt.err (%p277)
  %s280 = scalar_lea.sflag [#allocation6], 3
  %281 = vsyncmov %s280
  %s282 = vpop.sfrf %281
  %p283 = scmp.eq.s32.totalorder %s282, 0
  %p284 = pneg %p283
  %286 = shalt.err (%p284)

</llo_original>
